<compile_context>
chip_gen: v7x
topology: tpu7x:2x2x1
jax: 0.10.0
libtpu: 0.0.40
codegen_flags: <defaults>
</compile_context>

<pallas_src>
import functools
import math

import jax
import jax.numpy as jnp
from jax.experimental import pallas as pl
from jax.experimental.pallas import tpu as pltpu


def _round_up(x, m):
    return (x + m - 1) // m * m


# -----------------------------------------------------------------------------
# Kernel: fused twin-critic MLP  y = relu(relu(x@W1+b1)@W2+b2)@W3+b3
# (W1 concatenated, W2/W3 block-diagonal, everything zero-padded to SLABW=128).
# -----------------------------------------------------------------------------
def _qnet_kernel(x_ref, p_ref, b_ref, o_ref, *, id_pad, slabw, rw1, rw2, rw3):
    # x arrives as f32; cast to bf16 on the VPU (free, rides a spare slot).
    x = x_ref[...].astype(jnp.bfloat16)              # (TB, id_pad) bf16

    # Static, sublane-aligned views of the resident bf16 parameter slab.
    w1 = p_ref[rw1:rw1 + id_pad, :]                  # (id_pad, SLABW)
    w2 = p_ref[rw2:rw2 + slabw, :]                   # (SLABW, SLABW)
    w3 = p_ref[rw3:rw3 + slabw, :]                   # (SLABW, SLABW)

    # f32 biases (rows 0..2 of the small bias block).
    b1 = b_ref[0:1, :]
    b2 = b_ref[1:2, :]
    b3 = b_ref[2:3, :]

    h = jnp.dot(x, w1, preferred_element_type=jnp.float32) + b1
    h = jnp.maximum(h, 0.0).astype(jnp.bfloat16)
    h = jnp.dot(h, w2, preferred_element_type=jnp.float32) + b2
    h = jnp.maximum(h, 0.0).astype(jnp.bfloat16)
    y = jnp.dot(h, w3, preferred_element_type=jnp.float32) + b3
    o_ref[...] = y.astype(o_ref.dtype)               # lane-dense bf16 store


# -----------------------------------------------------------------------------
# Parameter packing: fuse the two critics + pad into one slab (done ONCE).
# -----------------------------------------------------------------------------
def pack_qnetwork_params(params, input_dim, output_dim, fc1, fc2,
                         dtype=jnp.bfloat16):
    h1, h2, o2 = 2 * fc1, 2 * fc2, 2 * output_dim
    slabw = _round_up(max(h1, h2, o2), 128)    # lane-dense slab / output width
    id_pad = _round_up(input_dim, 16)          # bf16 sublane-aligned W1 section
    rw1, rw2 = 0, id_pad
    rw3 = rw2 + slabw
    rows = rw3 + slabw

    slab = jnp.zeros((rows, slabw), jnp.float32)

    # Layer 1: W1 = [w1a | w1b]   (input_dim, 2*fc1)
    w1 = jnp.concatenate([params["w1a"], params["w1b"]], axis=1)
    slab = slab.at[rw1:rw1 + input_dim, :h1].set(w1)

    # Layer 2: block-diag(w2a, w2b)   (2*fc1, 2*fc2)
    slab = slab.at[rw2:rw2 + fc1, :fc2].set(params["w2a"])
    slab = slab.at[rw2 + fc1:rw2 + h1, fc2:h2].set(params["w2b"])

    # Layer 3: block-diag(w3a, w3b)   (2*fc2, 2*output_dim)
    slab = slab.at[rw3:rw3 + fc2, :output_dim].set(params["w3a"])
    slab = slab.at[rw3 + fc2:rw3 + h2, output_dim:o2].set(params["w3b"])

    # Biases stay f32 (parity with the PyTorch module); one row per layer,
    # zero-padded to slab width, 8 rows for an aligned (8, 128) f32 tile.
    bias = jnp.zeros((8, slabw), jnp.float32)
    bias = bias.at[0, :h1].set(
        jnp.concatenate([params["b1a"][0], params["b1b"][0]]))
    bias = bias.at[1, :h2].set(
        jnp.concatenate([params["b2a"][0], params["b2b"][0]]))
    bias = bias.at[2, :o2].set(
        jnp.concatenate([params["b3a"][0], params["b3b"][0]]))

    meta = dict(input_dim=input_dim, out_dim=output_dim, fc1=fc1, fc2=fc2,
                id_pad=id_pad, slabw=slabw, rows=rows,
                rw1=rw1, rw2=rw2, rw3=rw3)
    return slab.astype(dtype), bias, meta


# -----------------------------------------------------------------------------
# Batch-tile selection (generation-aware heuristic).
# -----------------------------------------------------------------------------
def _choose_tb(batch):
    b16 = _round_up(batch, 16)          # bf16 packs 16 rows per sublane group
    if b16 <= 128:
        return b16                      # one tile: per-step overhead dominates
    if b16 <= 2048:
        # >=2 parallel tiles: shards across the 2 TensorCores on v7x; on
        # v5e/v6e (1 TC) the >=64-row tiles keep per-step overhead amortized.
        return _round_up(pl.cdiv(b16, 2), 16)
    return 1024                         # very large B: big tiles, grid >= 3


# -----------------------------------------------------------------------------
# Forward wrapper
# -----------------------------------------------------------------------------
def qnetwork_forward(xu, slab, bias, meta):
    """xu: (B, input_dim) float32; slab/bias/meta: from pack_qnetwork_params."""
    B, input_dim = xu.shape
    id_pad, slabw, rows = meta["id_pad"], meta["slabw"], meta["rows"]
    out_dim = meta["out_dim"]

    tb = _choose_tb(B)
    b_pad = _round_up(B, tb)

    # Pad only if needed; NO wrapper-side dtype cast (done in-kernel).
    x = xu
    if b_pad != B or id_pad != input_dim:
        x = jnp.pad(x, ((0, b_pad - B), (0, id_pad - input_dim)))

    kernel = functools.partial(
        _qnet_kernel, id_pad=id_pad, slabw=slabw,
        rw1=meta["rw1"], rw2=meta["rw2"], rw3=meta["rw3"])

    flops = 2 * b_pad * (id_pad * slabw + 2 * slabw * slabw)
    bytes_accessed = (x.size * x.dtype.itemsize
                      + slab.size * slab.dtype.itemsize
                      + bias.size * bias.dtype.itemsize
                      + b_pad * slabw * 2)             # bf16 output writeback

    out = pl.pallas_call(
        kernel,
        out_shape=jax.ShapeDtypeStruct((b_pad, slabw), jnp.bfloat16),
        grid=(b_pad // tb,),
        in_specs=[
            pl.BlockSpec((tb, id_pad), lambda i: (i, 0)),    # x: batch-tiled
            pl.BlockSpec((rows, slabw), lambda i: (0, 0)),   # slab: resident
            pl.BlockSpec((8, slabw), lambda i: (0, 0)),      # f32 biases
        ],
        out_specs=pl.BlockSpec((tb, slabw), lambda i: (i, 0)),
        compiler_params=pltpu.CompilerParams(
            dimension_semantics=("parallel",)),
        cost_estimate=pl.CostEstimate(
            flops=flops, transcendentals=0, bytes_accessed=bytes_accessed),
    )(x, slab, bias)

    q1 = out[:B, :out_dim].astype(jnp.float32)
    q2 = out[:B, out_dim:2 * out_dim].astype(jnp.float32)
    return q1, q2


# -----------------------------------------------------------------------------
# Init (matches the PyTorch module: xavier_uniform weights, zero biases).
# Weights stored as (in_features, out_features) so the kernel does x @ W.
# -----------------------------------------------------------------------------
def _xavier_uniform(key, fan_in, fan_out, gain=1.0):
    limit = gain * math.sqrt(6.0 / (fan_in + fan_out))
    return jax.random.uniform(key, (fan_in, fan_out), jnp.float32,
                              minval=-limit, maxval=limit)


def init_qnetwork_params(key, input_dim, output_dim, fc1_size, fc2_size):
    ks = jax.random.split(key, 6)
    return {
        # Q1 critic
        "w1a": _xavier_uniform(ks[0], input_dim, fc1_size),
        "b1a": jnp.zeros((1, fc1_size), jnp.float32),
        "w2a": _xavier_uniform(ks[1], fc1_size, fc2_size),
        "b2a": jnp.zeros((1, fc2_size), jnp.float32),
        "w3a": _xavier_uniform(ks[2], fc2_size, output_dim),
        "b3a": jnp.zeros((1, output_dim), jnp.float32),
        # Q2 critic
        "w1b": _xavier_uniform(ks[3], input_dim, fc1_size),
        "b1b": jnp.zeros((1, fc1_size), jnp.float32),
        "w2b": _xavier_uniform(ks[4], fc1_size, fc2_size),
        "b2b": jnp.zeros((1, fc2_size), jnp.float32),
        "w3b": _xavier_uniform(ks[5], fc2_size, output_dim),
        "b3b": jnp.zeros((1, output_dim), jnp.float32),
    }


# -----------------------------------------------------------------------------
# References
# -----------------------------------------------------------------------------
def _reference_forward_f32(xu, p):
    def mlp(w1, b1, w2, b2, w3, b3):
        h = jnp.maximum(xu @ w1 + b1, 0.0)
        h = jnp.maximum(h @ w2 + b2, 0.0)
        return h @ w3 + b3
    return (mlp(p["w1a"], p["b1a"], p["w2a"], p["b2a"], p["w3a"], p["b3a"]),
            mlp(p["w1b"], p["b1b"], p["w2b"], p["b2b"], p["w3b"], p["b3b"]))


def _reference_forward_bf16(xu, p):
    """Mirrors the kernel's precision: bf16 operands, f32 accum, f32 bias."""
    bf = jnp.bfloat16

    def lin(x, w, b):
        y = jnp.dot(x.astype(bf), w.astype(bf),
                    preferred_element_type=jnp.float32)
        return y + b

    def mlp(w1, b1, w2, b2, w3, b3):
        h = jnp.maximum(lin(xu, w1, b1), 0.0)
        h = jnp.maximum(lin(h, w2, b2), 0.0)
        return lin(h, w3, b3)

    return (mlp(p["w1a"], p["b1a"], p["w2a"], p["b2a"], p["w3a"], p["b3a"]),
            mlp(p["w1b"], p["b1b"], p["w2b"], p["b2b"], p["w3b"], p["b3b"]))


if __name__ == "__main__":
    key = jax.random.PRNGKey(0)
    k_param, k_x = jax.random.split(key)

    # Small SAC-style sizes: xu = concat(state, action).
    batch, input_dim, output_dim = 8, 16, 1
    fc1_size, fc2_size = 32, 32

    params = init_qnetwork_params(k_param, input_dim, output_dim,
                                  fc1_size, fc2_size)
    xu = jax.random.normal(k_x, (batch, input_dim), jnp.float32)

    slab, bias, meta = pack_qnetwork_params(params, input_dim, output_dim,
                                            fc1_size, fc2_size)

    q1, q2 = qnetwork_forward(xu, slab, bias, meta)
    jax.block_until_ready((q1, q2))

    # Precision-matched reference (bf16 operands, f32 accumulation/bias).
    r1, r2 = _reference_forward_bf16(xu, params)
    # Full-f32 reference: loose sanity check of the forward semantics.
    f1, f2 = _reference_forward_f32(xu, params)

    assert q1.shape == (batch, output_dim) and q2.shape == (batch, output_dim)
    # Kernel output is rounded to bf16 on store -> allow ~1 bf16 ulp of slack.
    assert jnp.allclose(q1, r1, atol=2e-2, rtol=2e-2), "q1 mismatch vs bf16 ref"
    assert jnp.allclose(q2, r2, atol=2e-2, rtol=2e-2), "q2 mismatch vs bf16 ref"
    assert jnp.allclose(q1, f1, atol=0.3), "q1 far from f32 reference"
    assert jnp.allclose(q2, f2, atol=0.3), "q2 far from f32 reference"

    print("KERNEL_OK")
</pallas_src>

<mosaic_0001>
module attributes {stable_mosaic.version = 11 : i64} {
  func.func @_qnet_kernel(%arg0: i32, %arg1: memref<16x16xf32, #tpu.memory_space<vmem>>, %arg2: memref<272x128xbf16, #tpu.memory_space<vmem>>, %arg3: memref<8x128xf32, #tpu.memory_space<vmem>>, %arg4: memref<16x128xbf16, #tpu.memory_space<vmem>>) attributes {dimension_semantics = [#tpu.dimension_semantics<parallel>], iteration_bounds = array<i64: 1>, scalar_prefetch = 0 : i64, scratch_operands = 0 : i64, tpu.core_type = #tpu.core_type<tc>, window_params = [{transform_indices = @transform_0, window_bounds = array<i64: 16, 16>}, {pipeline_mode = #tpu.pipeline_mode<synchronous>, transform_indices = @transform_1, window_bounds = array<i64: 272, 128>}, {pipeline_mode = #tpu.pipeline_mode<synchronous>, transform_indices = @transform_2, window_bounds = array<i64: 8, 128>}, {transform_indices = @transform_3, window_bounds = array<i64: 16, 128>}]} {
    %c0 = arith.constant 0 : index
    %c0_0 = arith.constant 0 : index
    %0 = vector.load %arg1[%c0, %c0_0] : memref<16x16xf32, #tpu.memory_space<vmem>>, vector<16x16xf32>
    %1 = arith.truncf %0 : vector<16x16xf32> to vector<16x16xbf16>
    %c0_1 = arith.constant 0 : index
    %c0_2 = arith.constant 0 : index
    %2 = vector.load %arg2[%c0_1, %c0_2] : memref<272x128xbf16, #tpu.memory_space<vmem>>, vector<16x128xbf16>
    %c16 = arith.constant 16 : index
    %c0_3 = arith.constant 0 : index
    %3 = vector.load %arg2[%c16, %c0_3] : memref<272x128xbf16, #tpu.memory_space<vmem>>, vector<128x128xbf16>
    %c144 = arith.constant 144 : index
    %c0_4 = arith.constant 0 : index
    %4 = vector.load %arg2[%c144, %c0_4] : memref<272x128xbf16, #tpu.memory_space<vmem>>, vector<128x128xbf16>
    %c0_5 = arith.constant 0 : index
    %c0_6 = arith.constant 0 : index
    %5 = vector.load %arg3[%c0_5, %c0_6] : memref<8x128xf32, #tpu.memory_space<vmem>>, vector<1x128xf32>
    %c1 = arith.constant 1 : index
    %c0_7 = arith.constant 0 : index
    %6 = vector.load %arg3[%c1, %c0_7] : memref<8x128xf32, #tpu.memory_space<vmem>>, vector<1x128xf32>
    %c2 = arith.constant 2 : index
    %c0_8 = arith.constant 0 : index
    %7 = vector.load %arg3[%c2, %c0_8] : memref<8x128xf32, #tpu.memory_space<vmem>>, vector<1x128xf32>
    %cst = arith.constant dense<0.000000e+00> : vector<16x128xf32>
    %8 = tpu.matmul %1, %2, %cst {dimension_numbers = #tpu.dot_dimension_numbers<[1], [0], [0], [1], [0, 0, 1, 1], [], []>} : vector<16x16xbf16>, vector<16x128xbf16>, vector<16x128xf32> -> vector<16x128xf32>
    %9 = vector.broadcast %5 : vector<1x128xf32> to vector<16x128xf32>
    %10 = arith.addf %8, %9 : vector<16x128xf32>
    %cst_9 = arith.constant 0.000000e+00 : f32
    %11 = vector.broadcast %cst_9 : f32 to vector<16x128xf32>
    %12 = arith.maximumf %10, %11 : vector<16x128xf32>
    %13 = arith.truncf %12 : vector<16x128xf32> to vector<16x128xbf16>
    %cst_10 = arith.constant dense<0.000000e+00> : vector<16x128xf32>
    %14 = tpu.matmul %13, %3, %cst_10 {dimension_numbers = #tpu.dot_dimension_numbers<[1], [0], [0], [1], [0, 0, 1, 1], [], []>} : vector<16x128xbf16>, vector<128x128xbf16>, vector<16x128xf32> -> vector<16x128xf32>
    %15 = vector.broadcast %6 : vector<1x128xf32> to vector<16x128xf32>
    %16 = arith.addf %14, %15 : vector<16x128xf32>
    %cst_11 = arith.constant 0.000000e+00 : f32
    %17 = vector.broadcast %cst_11 : f32 to vector<16x128xf32>
    %18 = arith.maximumf %16, %17 : vector<16x128xf32>
    %19 = arith.truncf %18 : vector<16x128xf32> to vector<16x128xbf16>
    %cst_12 = arith.constant dense<0.000000e+00> : vector<16x128xf32>
    %20 = tpu.matmul %19, %4, %cst_12 {dimension_numbers = #tpu.dot_dimension_numbers<[1], [0], [0], [1], [0, 0, 1, 1], [], []>} : vector<16x128xbf16>, vector<128x128xbf16>, vector<16x128xf32> -> vector<16x128xf32>
    %21 = vector.broadcast %7 : vector<1x128xf32> to vector<16x128xf32>
    %22 = arith.addf %20, %21 : vector<16x128xf32>
    %23 = arith.truncf %22 : vector<16x128xf32> to vector<16x128xbf16>
    %c0_13 = arith.constant 0 : index
    %c0_14 = arith.constant 0 : index
    %24 = vector.load %arg4[%c0_13, %c0_14] : memref<16x128xbf16, #tpu.memory_space<vmem>>, vector<16x128xbf16>
    tpu.vector_store %arg4[%c0_13, %c0_14], %23 {strides = array<i32>} : memref<16x128xbf16, #tpu.memory_space<vmem>>, vector<16x128xbf16>,
    return
  }
  func.func @transform_0(%arg0: i32) -> (i32, i32) {
    %c0_i32 = arith.constant 0 : i32
    %c0_i32_0 = arith.constant 0 : i32
    return %arg0, %c0_i32 : i32, i32
  }
  func.func @transform_1(%arg0: i32) -> (i32, i32) {
    %c0_i32 = arith.constant 0 : i32
    %c0_i32_0 = arith.constant 0 : i32
    %c0_i32_1 = arith.constant 0 : i32
    return %c0_i32, %c0_i32_0 : i32, i32
  }
  func.func @transform_2(%arg0: i32) -> (i32, i32) {
    %c0_i32 = arith.constant 0 : i32
    %c0_i32_0 = arith.constant 0 : i32
    %c0_i32_1 = arith.constant 0 : i32
    return %c0_i32, %c0_i32_0 : i32, i32
  }
  func.func @transform_3(%arg0: i32) -> (i32, i32) {
    %c0_i32 = arith.constant 0 : i32
    %c0_i32_0 = arith.constant 0 : i32
    return %arg0, %c0_i32 : i32, i32
  }
}

</mosaic_0001>

<llo_original>
// kernel: tpu_custom_call.1
$region0: #{tpu_custom_call.1}
  #allocation0 [shape = 'u32[]', space=smem, size = 0x4, offset = 0x4, fixed_abs, tag = 'smem constant byte address 0x4 - core index']
  #allocation1 [shape = 'u32[144,128]{1,0:T(1,128)}', space=vmem, size = 0x12000, scoped, tag = 'internal scratch']
  %s0 = inlined_call_operand.hbm [shape: f32[16,16], index: 0, kind: input, shape index: {}]
  %s1 = inlined_call_operand.hbm [shape: bf16[272,128], index: 1, kind: input, shape index: {}]
  %s2 = inlined_call_operand.hbm [shape: f32[8,128], index: 2, kind: input, shape index: {}]
  %s3 = inlined_call_operand.hbm [shape: bf16[16,128], index: 3, kind: output, shape index: {}]
  %s4 = sld [smem:[#allocation0]]
  $region34: #{tpu_custom_call.1} parent=0
    _
  %s6 = ssub.s32 1, %s4
  %s7 = scalar_select 0, %s6, %s4
  $region1: #{tpu_custom_call.1} parent=0
    #allocation2 [shape = 'u8[8192]{0}', space=vmem, size = 0x2000, scoped, tag = 'input window, operand 0, single buffered']
    #allocation3 [shape = 's32[1]{0}', space=sflag, size = 0x4, scoped, tag = 'scoped memory for tpu_custom_call.1']
    #allocation4 [shape = 's32[1]{0}', space=sflag, size = 0x4, scoped, tag = 'scoped memory for tpu_custom_call.1']
    #allocation5 [shape = 'u8[69632]{0}', space=vmem, size = 0x11000, scoped, tag = 'input window, operand 1, single buffered']
    #allocation6 [shape = 's32[1]{0}', space=sflag, size = 0x4, scoped, tag = 'scoped memory for tpu_custom_call.1']
    #allocation7 [shape = 'u8[4096]{0}', space=vmem, size = 0x1000, scoped, tag = 'input window, operand 2, single buffered']
    #allocation8 [shape = 'u8[4096]{0}', space=vmem, size = 0x1000, scoped, tag = 'output window, operand 0, single buffered']
    %8 = vsyncpa [#allocation3], 0
    %9 = vsyncpa [#allocation6], 0
    %10 = vsyncpa [#allocation4], 0
    // Predicated region
    $region2: #{tpu_custom_call.1} parent=1 // pred_check
      _
    $region3: #{tpu_custom_call.1} parent=1 // pred_check_branch
      %12 = sbr.rel (0) target = $region5
    $region4: #{tpu_custom_call.1} parent=1 // pred_region
      %s14 = ssub.s32 256, 256
      %15 = vsyncadd [#allocation3], %s14
      %s16 = sshll.u32 [#allocation2], 4
      %s17 = int_to_ptr.vmem [resolvable:$true] %s16
      %22 = dma.hbm_to_vmem [thread:$0]  %s0, 256, %s17, [#allocation3], 128, 128, 8
    $region5: #{tpu_custom_call.1} parent=1 // pred_fallthru
      _
    // Predicated region
    $region6: #{tpu_custom_call.1} parent=1 // pred_check
      _
    $region7: #{tpu_custom_call.1} parent=1 // pred_check_branch
      %24 = sbr.rel (0) target = $region9
    $region8: #{tpu_custom_call.1} parent=1 // pred_region
      %s26 = ssub.s32 2176, 2176
      %27 = vsyncadd [#allocation6], %s26
      %s28 = sshll.u32 [#allocation5], 4
      %s29 = int_to_ptr.vmem [resolvable:$true] %s28
      %34 = dma.hbm_to_vmem [thread:$0]  %s1, 2176, %s29, [#allocation6], 64, 64, 4
    $region9: #{tpu_custom_call.1} parent=1 // pred_fallthru
      _
    // Predicated region
    $region10: #{tpu_custom_call.1} parent=1 // pred_check
      _
    $region11: #{tpu_custom_call.1} parent=1 // pred_check_branch
      %36 = sbr.rel (0) target = $region13
    $region12: #{tpu_custom_call.1} parent=1 // pred_region
      %s38 = ssub.s32 128, 128
      %39 = vsyncadd [#allocation6], %s38
      %s41 = sshll.u32 [#allocation7], 4
      %s42 = int_to_ptr.vmem [resolvable:$true] %s41
      %44 = dma.hbm_to_vmem [thread:$0]  %s2, 128, %s42, [#allocation6]
    $region13: #{tpu_custom_call.1} parent=1 // pred_fallthru
      _
    // Predicated region
    $region14: #{tpu_custom_call.1} parent=1 // pred_check
      _
    $region15: #{tpu_custom_call.1} parent=1 // pred_check_branch
      %46 = sbr.rel (0) target = $region17
    $region16: #{tpu_custom_call.1} parent=1 // pred_region
      %47 = dma.done [#allocation3], 256
    $region17: #{tpu_custom_call.1} parent=1 // pred_fallthru
      _
    // Predicated region
    $region18: #{tpu_custom_call.1} parent=1 // pred_check
      _
    $region19: #{tpu_custom_call.1} parent=1 // pred_check_branch
      %49 = sbr.rel (0) target = $region21
    $region20: #{tpu_custom_call.1} parent=1 // pred_region
      %50 = dma.done [#allocation6], 2176
    $region21: #{tpu_custom_call.1} parent=1 // pred_fallthru
      _
    // Predicated region
    $region22: #{tpu_custom_call.1} parent=1 // pred_check
      _
    $region23: #{tpu_custom_call.1} parent=1 // pred_check_branch
      %52 = sbr.rel (0) target = $region25
    $region24: #{tpu_custom_call.1} parent=1 // pred_region
      %53 = dma.done [#allocation6], 128
    $region25: #{tpu_custom_call.1} parent=1 // pred_fallthru
      _
    %v55 = vld [vmem:[#allocation2] sm:$0xff]
    %v56 = vld [vmem:[#allocation2 + $0x8] sm:$0xff]
    %v57 = vpack.c.bf16 %v56, %v55
    %v58 = vld [vmem:[#allocation5] sm:$0xf]
    %v59 = vld [vmem:[#allocation5 + $0x4] sm:$0xf]
    %v60 = vld [vmem:[#allocation5 + $0x8] sm:$0xf]
    %v61 = vld [vmem:[#allocation5 + $0xc] sm:$0xf]
    %v62 = vld [vmem:[#allocation5 + $0x10] sm:$0xf]
    %v63 = vld [vmem:[#allocation5 + $0x14] sm:$0xf]
    %v64 = vld [vmem:[#allocation5 + $0x18] sm:$0xf]
    %v65 = vld [vmem:[#allocation5 + $0x1c] sm:$0xf]
    %v66 = vld [vmem:[#allocation5 + $0x20] sm:$0xf]
    %v67 = vld [vmem:[#allocation5 + $0x24] sm:$0xf]
    %v68 = vld [vmem:[#allocation5 + $0x28] sm:$0xf]
    %v69 = vld [vmem:[#allocation5 + $0x2c] sm:$0xf]
    %v70 = vld [vmem:[#allocation5 + $0x30] sm:$0xf]
    %v71 = vld [vmem:[#allocation5 + $0x34] sm:$0xf]
    %v72 = vld [vmem:[#allocation5 + $0x38] sm:$0xf]
    %v73 = vld [vmem:[#allocation5 + $0x3c] sm:$0xf]
    %v74 = vld [vmem:[#allocation5 + $0x40] sm:$0xf]
    %v75 = vld [vmem:[#allocation5 + $0x44] sm:$0xf]
    %v76 = vld [vmem:[#allocation5 + $0x48] sm:$0xf]
    %v77 = vld [vmem:[#allocation5 + $0x4c] sm:$0xf]
    %v78 = vld [vmem:[#allocation5 + $0x50] sm:$0xf]
    %v79 = vld [vmem:[#allocation5 + $0x54] sm:$0xf]
    %v80 = vld [vmem:[#allocation5 + $0x58] sm:$0xf]
    %v81 = vld [vmem:[#allocation5 + $0x5c] sm:$0xf]
    %v82 = vld [vmem:[#allocation5 + $0x60] sm:$0xf]
    %v83 = vld [vmem:[#allocation5 + $0x64] sm:$0xf]
    %v84 = vld [vmem:[#allocation5 + $0x68] sm:$0xf]
    %v85 = vld [vmem:[#allocation5 + $0x6c] sm:$0xf]
    %v86 = vld [vmem:[#allocation5 + $0x70] sm:$0xf]
    %v87 = vld [vmem:[#allocation5 + $0x74] sm:$0xf]
    %v88 = vld [vmem:[#allocation5 + $0x78] sm:$0xf]
    %v89 = vld [vmem:[#allocation5 + $0x7c] sm:$0xf]
    %v90 = vld [vmem:[#allocation5 + $0x80] sm:$0xf]
    %v91 = vld [vmem:[#allocation5 + $0x84] sm:$0xf]
    %v92 = vld [vmem:[#allocation7] sm:$0x1]
    %v93 = vld [vmem:[#allocation7 + $0x1] sm:$0x1]
    %v94 = vld [vmem:[#allocation7 + $0x2] sm:$0x1]
    %v95 = vlaneseq
    %v96 = vshrl.u32 %v95, 7
    %v97 = vsub.s32 0, %v96
    %v98 = vrot.slane %v92, %v97
    %v101 = vunpack.c.l.b16 %v58
    %v102 = vunpack.c.l.b16 %v59
    %v103 = vpack.c.b16 %v102, %v101
    %vm105 = vcmask 130048
    %v107 = vsel %vm105, %v57, 0
    %109 = vmatprep.subr.bf16.mxu0 0
    %110 = vmatpush1.bf16.msra.mxu0 %v103
    %111 = vmatprep.subr.bf16.mxu0 0
    %112 = vmatpush1.bf16.msra.mxu0 0
    %113 = vmatprep.subr.bf16.mxu0 0
    %114 = vmatpush1.bf16.msra.mxu0 0
    %115 = vmatprep.subr.bf16.mxu0 0
    %116 = vmatpush1.bf16.msra.mxu0 0
    %117 = vmatprep.subr.bf16.mxu0 0
    %118 = vmatpush1.bf16.msra.mxu0 0
    %119 = vmatprep.subr.bf16.mxu0 0
    %120 = vmatpush1.bf16.msra.mxu0 0
    %121 = vmatprep.subr.bf16.mxu0 0
    %122 = vmatpush1.bf16.msra.mxu0 0
    %123 = vmatprep.subr.bf16.mxu0 0
    %124 = vmatpush1.bf16.msra.mxu0 0
    %125 = vmatprep.subr.bf16.mxu0 0
    %126 = vmatpush1.bf16.msra.mxu0 0
    %127 = vmatprep.subr.bf16.mxu0 0
    %128 = vmatpush1.bf16.msra.mxu0 0
    %129 = vmatprep.subr.bf16.mxu0 0
    %130 = vmatpush1.bf16.msra.mxu0 0
    %131 = vmatprep.subr.bf16.mxu0 0
    %132 = vmatpush1.bf16.msra.mxu0 0
    %133 = vmatprep.subr.bf16.mxu0 0
    %134 = vmatpush1.bf16.msra.mxu0 0
    %135 = vmatprep.subr.bf16.mxu0 0
    %136 = vmatpush1.bf16.msra.mxu0 0
    %137 = vmatprep.subr.bf16.mxu0 0
    %138 = vmatpush1.bf16.msra.mxu0 0
    %139 = vmatprep.subr.bf16.mxu0 0
    %140 = vmatpush1.bf16.msra.mxu0 0
    %141 = vmatprep.mubr.bf16.mxu0 0
    %142 = vmatmul.mubr.bf16.gmra.mrb[0].mxu0 %v107
    %v143 = vpop.f32.mrb[0].mxu0
    %v144 = vadd.f32 %v98, %v143
    %v145 = vpop.f32.mrb[0].mxu0
    %v146 = vpop.f32.mrb[0].mxu0
    %v147 = vadd.f32 %v98, %v146
    %v148 = vpop.f32.mrb[0].mxu0
    %149 = vdwg.mxu0
    %v150 = vmax.f32 %v144, 0.0
    %v151 = vmax.f32 %v147, 0.0
    %v152 = vpack.c.bf16 %v151, %v150
    %v153 = vlaneseq
    %v154 = vshrl.u32 %v153, 7
    %v155 = vsub.s32 0, %v154
    %v156 = vrot.slane %v93, %v155
    %v173 = vunpack.c.l.b16 %v60
    %v174 = vunpack.c.l.b16 %v61
    %v175 = vunpack.c.l.b16 %v62
    %v176 = vunpack.c.l.b16 %v63
    %v177 = vunpack.c.l.b16 %v64
    %v178 = vunpack.c.l.b16 %v65
    %v179 = vunpack.c.l.b16 %v66
    %v180 = vunpack.c.l.b16 %v67
    %v181 = vunpack.c.l.b16 %v68
    %v182 = vunpack.c.l.b16 %v69
    %v183 = vunpack.c.l.b16 %v70
    %v184 = vunpack.c.l.b16 %v71
    %v185 = vunpack.c.l.b16 %v72
    %v186 = vunpack.c.l.b16 %v73
    %v187 = vunpack.c.l.b16 %v74
    %v188 = vunpack.c.l.b16 %v75
    %v189 = vpack.c.b16 %v174, %v173
    %v190 = vpack.c.b16 %v176, %v175
    %v191 = vpack.c.b16 %v178, %v177
    %v192 = vpack.c.b16 %v180, %v179
    %v193 = vpack.c.b16 %v182, %v181
    %v194 = vpack.c.b16 %v184, %v183
    %v195 = vpack.c.b16 %v186, %v185
    %v196 = vpack.c.b16 %v188, %v187
    %205 = vmatprep.subr.bf16.mxu0 0
    %206 = vmatpush1.bf16.msra.mxu0 %v189
    %207 = vmatprep.subr.bf16.mxu0 0
    %208 = vmatpush1.bf16.msra.mxu0 %v190
    %209 = vmatprep.subr.bf16.mxu0 0
    %210 = vmatpush1.bf16.msra.mxu0 %v191
    %211 = vmatprep.subr.bf16.mxu0 0
    %212 = vmatpush1.bf16.msra.mxu0 %v192
    %213 = vmatprep.subr.bf16.mxu0 0
    %214 = vmatpush1.bf16.msra.mxu0 %v193
    %215 = vmatprep.subr.bf16.mxu0 0
    %216 = vmatpush1.bf16.msra.mxu0 %v194
    %217 = vmatprep.subr.bf16.mxu0 0
    %218 = vmatpush1.bf16.msra.mxu0 %v195
    %219 = vmatprep.subr.bf16.mxu0 0
    %220 = vmatpush1.bf16.msra.mxu0 %v196
    %221 = vmatprep.subr.bf16.mxu0 0
    %222 = vmatpush1.bf16.msra.mxu0 0
    %223 = vmatprep.subr.bf16.mxu0 0
    %224 = vmatpush1.bf16.msra.mxu0 0
    %225 = vmatprep.subr.bf16.mxu0 0
    %226 = vmatpush1.bf16.msra.mxu0 0
    %227 = vmatprep.subr.bf16.mxu0 0
    %228 = vmatpush1.bf16.msra.mxu0 0
    %229 = vmatprep.subr.bf16.mxu0 0
    %230 = vmatpush1.bf16.msra.mxu0 0
    %231 = vmatprep.subr.bf16.mxu0 0
    %232 = vmatpush1.bf16.msra.mxu0 0
    %233 = vmatprep.subr.bf16.mxu0 0
    %234 = vmatpush1.bf16.msra.mxu0 0
    %235 = vmatprep.subr.bf16.mxu0 0
    %236 = vmatpush1.bf16.msra.mxu0 0
    %237 = vmatprep.mubr.bf16.mxu0 0
    %238 = vmatmul.mubr.bf16.gmra.mrb[0].mxu0 %v152
    %v239 = vpop.f32.mrb[0].mxu0
    %v240 = vadd.f32 %v156, %v239
    %v241 = vpop.f32.mrb[0].mxu0
    %v242 = vpop.f32.mrb[0].mxu0
    %v243 = vadd.f32 %v156, %v242
    %v244 = vpop.f32.mrb[0].mxu0
    %245 = vdwg.mxu0
    %v246 = vmax.f32 %v240, 0.0
    %v247 = vmax.f32 %v243, 0.0
    %v248 = vpack.c.bf16 %v247, %v246
    %v249 = vlaneseq
    %v250 = vshrl.u32 %v249, 7
    %v251 = vsub.s32 0, %v250
    %v252 = vrot.slane %v94, %v251
    %v269 = vunpack.c.l.b16 %v76
    %v270 = vunpack.c.l.b16 %v77
    %v271 = vunpack.c.l.b16 %v78
    %v272 = vunpack.c.l.b16 %v79
    %v273 = vunpack.c.l.b16 %v80
    %v274 = vunpack.c.l.b16 %v81
    %v275 = vunpack.c.l.b16 %v82
    %v276 = vunpack.c.l.b16 %v83
    %v277 = vunpack.c.l.b16 %v84
    %v278 = vunpack.c.l.b16 %v85
    %v279 = vunpack.c.l.b16 %v86
    %v280 = vunpack.c.l.b16 %v87
    %v281 = vunpack.c.l.b16 %v88
    %v282 = vunpack.c.l.b16 %v89
    %v283 = vunpack.c.l.b16 %v90
    %v284 = vunpack.c.l.b16 %v91
    %v285 = vpack.c.b16 %v270, %v269
    %v286 = vpack.c.b16 %v272, %v271
    %v287 = vpack.c.b16 %v274, %v273
    %v288 = vpack.c.b16 %v276, %v275
    %v289 = vpack.c.b16 %v278, %v277
    %v290 = vpack.c.b16 %v280, %v279
    %v291 = vpack.c.b16 %v282, %v281
    %v292 = vpack.c.b16 %v284, %v283
    %301 = vmatprep.subr.bf16.mxu0 0
    %302 = vmatpush1.bf16.msra.mxu0 %v285
    %303 = vmatprep.subr.bf16.mxu0 0
    %304 = vmatpush1.bf16.msra.mxu0 %v286
    %305 = vmatprep.subr.bf16.mxu0 0
    %306 = vmatpush1.bf16.msra.mxu0 %v287
    %307 = vmatprep.subr.bf16.mxu0 0
    %308 = vmatpush1.bf16.msra.mxu0 %v288
    %309 = vmatprep.subr.bf16.mxu0 0
    %310 = vmatpush1.bf16.msra.mxu0 %v289
    %311 = vmatprep.subr.bf16.mxu0 0
    %312 = vmatpush1.bf16.msra.mxu0 %v290
    %313 = vmatprep.subr.bf16.mxu0 0
    %314 = vmatpush1.bf16.msra.mxu0 %v291
    %315 = vmatprep.subr.bf16.mxu0 0
    %316 = vmatpush1.bf16.msra.mxu0 %v292
    %317 = vmatprep.subr.bf16.mxu0 0
    %318 = vmatpush1.bf16.msra.mxu0 0
    %319 = vmatprep.subr.bf16.mxu0 0
    %320 = vmatpush1.bf16.msra.mxu0 0
    %321 = vmatprep.subr.bf16.mxu0 0
    %322 = vmatpush1.bf16.msra.mxu0 0
    %323 = vmatprep.subr.bf16.mxu0 0
    %324 = vmatpush1.bf16.msra.mxu0 0
    %325 = vmatprep.subr.bf16.mxu0 0
    %326 = vmatpush1.bf16.msra.mxu0 0
    %327 = vmatprep.subr.bf16.mxu0 0
    %328 = vmatpush1.bf16.msra.mxu0 0
    %329 = vmatprep.subr.bf16.mxu0 0
    %330 = vmatpush1.bf16.msra.mxu0 0
    %331 = vmatprep.subr.bf16.mxu0 0
    %332 = vmatpush1.bf16.msra.mxu0 0
    %333 = vmatprep.mubr.bf16.mxu0 0
    %334 = vmatmul.mubr.bf16.gmra.mrb[0].mxu0 %v248
    %v335 = vpop.f32.mrb[0].mxu0
    %v336 = vadd.f32 %v252, %v335
    %v337 = vpop.f32.mrb[0].mxu0
    %v338 = vpop.f32.mrb[0].mxu0
    %v339 = vadd.f32 %v252, %v338
    %v340 = vpop.f32.mrb[0].mxu0
    %341 = vdwg.mxu0
    %v342 = vpack.c.bf16 %v339, %v336
    %v344 = vunpack.c.l.b16 %v342
    %v345 = vunpack.c.h.b16 %v342
    %v346 = vpack.c.b16 %v344, %v344
    %v347 = vpack.c.b16 %v345, %v345
    %350 = vst [vmem:[#allocation8] sm:$0xf] %v346
    %351 = vst [vmem:[#allocation8 + $0x4] sm:$0xf] %v347
    // Predicated region
    $region26: #{tpu_custom_call.1} parent=1 // pred_check
      _
    $region27: #{tpu_custom_call.1} parent=1 // pred_check_branch
      %353 = sbr.rel (0) target = $region29
    $region28: #{tpu_custom_call.1} parent=1 // pred_region
      %s355 = ssub.s32 128, 128
      %356 = vsyncadd [#allocation4], %s355
      %s357 = sshll.u32 [#allocation8], 4
      %s358 = int_to_ptr.vmem [resolvable:$true] %s357
      %363 = dma.vmem_to_hbm [thread:$0]  %s358, 128, %s3, [#allocation4], 64, 64, 4
    $region29: #{tpu_custom_call.1} parent=1 // pred_fallthru
      _
    // Predicated region
    $region30: #{tpu_custom_call.1} parent=1 // pred_check
      _
    $region31: #{tpu_custom_call.1} parent=1 // pred_check_branch
      %365 = sbr.rel (0) target = $region33
    $region32: #{tpu_custom_call.1} parent=1 // pred_region
      %366 = dma.done [#allocation4], 128
    $region33: #{tpu_custom_call.1} parent=1 // pred_fallthru
      _
    %367 = vsyncpa [#allocation3], 1
    %368 = vsyncpa [#allocation6], 1
    %369 = vsyncpa [#allocation4], 1

</llo_original>
